<compile_context>
chip_gen: v7x
topology: tpu7x:2x2x1
jax: 0.10.0
libtpu: 0.0.40
codegen_flags: <defaults>
</compile_context>

<pallas_src>
import jax
import jax.numpy as jnp
from jax import lax
from jax.experimental import pallas as pl
from jax.experimental.pallas import tpu as pltpu

_EPS = 1e-5  # nn.LayerNorm default


def _channel_norm_kernel(x_ref, gamma_ref, beta_ref, o_ref):
    # x_ref block: (1, C, T) -- C on sublanes, spatial tile T on lanes.
    x = x_ref[0].astype(jnp.float32)                      # (C, T)

    # LayerNorm over the channel axis (axis 0), biased variance (PyTorch).
    # Single traversal: center once, reuse (x - mean) for variance and affine.
    mean = jnp.mean(x, axis=0, keepdims=True)             # (1, T)
    xm = x - mean
    var = jnp.mean(xm * xm, axis=0, keepdims=True)        # (1, T)
    inv_std = lax.rsqrt(var + _EPS)

    # Affine: gamma/beta are (C, 1) and broadcast over the spatial lanes.
    # All ops are per-lane independent -> garbage lanes of a ragged last
    # block never contaminate valid lanes (and their stores are masked).
    y = xm * inv_std * gamma_ref[...] + beta_ref[...]
    o_ref[0] = y.astype(o_ref.dtype)


def _round_down_128(n):
    return max(128, (n // 128) * 128)


def channel_norm(x, gamma, beta, *, tile_hw=None):
    """x: (B, C, H, W); gamma, beta: (C,).  Returns (B, C, H, W)."""
    B, C, H, W = x.shape
    hw = H * W
    itemsize = jnp.dtype(x.dtype).itemsize

    # ---- generation-aware VMEM capacity (v7x: 64 MiB/TC, v5e/v6e: 128 MiB) --
    try:
        vmem_cap = int(pltpu.get_tpu_info().vmem_capacity_bytes)
    except Exception:
        vmem_cap = 64 << 20  # conservative (v7x-safe) fallback

    # Per-spatial-column VMEM: double-buffered in + out blocks at input dtype,
    # plus f32 compute temporaries (x_f32 / xm / y) that land in VMEM once the
    # tile exceeds the vreg file.
    n_bufs = 2
    n_f32_tmp = 2 if x.dtype == jnp.float32 else 3
    bytes_per_col = C * (2 * n_bufs * itemsize + n_f32_tmp * 4)

    # ---- tile selection: largest lane-dense spatial tile within budget ------
    if tile_hw is None:
        budget = min(vmem_cap // 4, 32 << 20)   # 16 MiB on v7x, 32 MiB on v5e/v6e
        tile_hw = min(_round_down_128(budget // bytes_per_col), 8192)
    hw_pad128 = ((hw + 127) // 128) * 128
    tile_hw = _round_down_128(min(tile_hw, hw_pad128))

    # v7x megacore: expose enough parallel grid steps to feed both TensorCores.
    def _n_steps(t):
        return B * ((hw + t - 1) // t)

    while tile_hw > 512 and _n_steps(tile_hw) < 8:
        tile_hw = max(512, ((tile_hw // 2) // 128) * 128)

    num_tiles = (hw + tile_hw - 1) // tile_hw   # ragged last block handled by Pallas

    # ---- layout plumbing (free reshape; no host-side pad or output slice) ---
    x3 = x.reshape(B, C, hw)
    g2 = gamma.reshape(C, 1).astype(jnp.float32)
    b2 = beta.reshape(C, 1).astype(jnp.float32)

    # ---- explicit VMEM limit, consistent with the tile choice ----------------
    block_bytes = 2 * n_bufs * C * tile_hw * itemsize      # in + out, double-buffered
    tmp_bytes = n_f32_tmp * C * tile_hw * 4                 # f32 temporaries
    param_bytes = 2 * 2 * ((C + 7) // 8 * 8) * 128 * 4      # gamma/beta (padded tiles)
    vmem_limit = min(
        max(block_bytes + tmp_bytes + param_bytes + (4 << 20), 16 << 20),
        vmem_cap * 3 // 4,                                   # ~48 MiB v7x, ~96 MiB v5e/v6e
    )

    cost = pl.CostEstimate(
        flops=int(8 * B * C * hw),
        transcendentals=int(B * hw),                         # rsqrt per pixel
        bytes_accessed=int(2 * B * C * hw * itemsize + 2 * C * 4),
    )

    out = pl.pallas_call(
        _channel_norm_kernel,
        out_shape=jax.ShapeDtypeStruct((B, C, hw), x.dtype),
        grid_spec=pltpu.PrefetchScalarGridSpec(
            num_scalar_prefetch=0,
            grid=(B, num_tiles),
            in_specs=[
                pl.BlockSpec((1, C, tile_hw), lambda b, j: (b, 0, j)),  # x tile
                pl.BlockSpec((C, 1), lambda b, j: (0, 0)),              # gamma
                pl.BlockSpec((C, 1), lambda b, j: (0, 0)),              # beta
            ],
            out_specs=pl.BlockSpec((1, C, tile_hw), lambda b, j: (b, 0, j)),
        ),
        compiler_params=pltpu.CompilerParams(
            dimension_semantics=("parallel", "parallel"),
            vmem_limit_bytes=int(vmem_limit),
        ),
        cost_estimate=cost,
    )(x3, g2, b2)

    return out.reshape(B, C, H, W)


def _reference(x, gamma, beta):
    """Pure-JAX reference of the PyTorch ChannelNorm (LayerNorm over C of NCHW)."""
    xf = x.astype(jnp.float32)
    mean = jnp.mean(xf, axis=1, keepdims=True)
    var = jnp.mean((xf - mean) ** 2, axis=1, keepdims=True)
    xn = (xf - mean) / jnp.sqrt(var + _EPS)
    y = xn * gamma.reshape(1, -1, 1, 1) + beta.reshape(1, -1, 1, 1)
    return y.astype(x.dtype)


if __name__ == "__main__":
    key = jax.random.PRNGKey(0)
    kx, kg, kb = jax.random.split(key, 3)

    channels = 128
    gamma = 1.0 + 0.1 * jax.random.normal(kg, (channels,), jnp.float32)
    beta = 0.1 * jax.random.normal(kb, (channels,), jnp.float32)

    # Two small NCHW cases: H*W divisible by 128, and a ragged spatial size
    # (exercises the no-pad / masked last-block path).
    for (batch, height, width) in [(2, 16, 16), (2, 16, 15)]:
        x = jax.random.normal(kx, (batch, channels, height, width), dtype=jnp.float32)
        y = jax.block_until_ready(channel_norm(x, gamma, beta))
        y_ref = _reference(x, gamma, beta)
        assert y.shape == x.shape
        assert jnp.allclose(y, y_ref, atol=1e-4, rtol=1e-4), "mismatch vs reference"

    print("KERNEL_OK")
</pallas_src>

<mosaic_0001>
module attributes {stable_mosaic.version = 11 : i64} {
  func.func @_channel_norm_kernel(%arg0: i32, %arg1: i32, %arg2: memref<1x128x256xf32, #tpu.memory_space<vmem>>, %arg3: memref<128x1xf32, #tpu.memory_space<vmem>>, %arg4: memref<128x1xf32, #tpu.memory_space<vmem>>, %arg5: memref<1x128x256xf32, #tpu.memory_space<vmem>>) attributes {dimension_semantics = [#tpu.dimension_semantics<parallel>, #tpu.dimension_semantics<parallel>], iteration_bounds = array<i64: 2, 1>, scalar_prefetch = 0 : i64, scratch_operands = 0 : i64, tpu.core_type = #tpu.core_type<tc>, window_params = [{transform_indices = @transform_0, window_bounds = array<i64: 1, 128, 256>}, {pipeline_mode = #tpu.pipeline_mode<synchronous>, transform_indices = @transform_1, window_bounds = array<i64: 128, 1>}, {pipeline_mode = #tpu.pipeline_mode<synchronous>, transform_indices = @transform_2, window_bounds = array<i64: 128, 1>}, {transform_indices = @transform_3, window_bounds = array<i64: 1, 128, 256>}]} {
    %c0 = arith.constant 0 : index
    %c0_0 = arith.constant 0 : index
    %c0_1 = arith.constant 0 : index
    %0 = vector.load %arg2[%c0, %c0_0, %c0_1] : memref<1x128x256xf32, #tpu.memory_space<vmem>>, vector<1x128x256xf32>
    %1 = vector.shape_cast %0 : vector<1x128x256xf32> to vector<128x256xf32>
    %cst = arith.constant dense<0.000000e+00> : vector<256xf32>
    %2 = vector.multi_reduction <add>, %1, %cst [0] : vector<128x256xf32> to vector<256xf32>
    %3 = vector.shape_cast %2 : vector<256xf32> to vector<1x256xf32>
    %cst_2 = arith.constant 1.280000e+02 : f32
    %4 = vector.broadcast %cst_2 : f32 to vector<1x256xf32>
    %5 = arith.divf %3, %4 : vector<1x256xf32>
    %6 = vector.broadcast %5 : vector<1x256xf32> to vector<128x256xf32>
    %7 = arith.subf %1, %6 : vector<128x256xf32>
    %8 = arith.mulf %7, %7 : vector<128x256xf32>
    %cst_3 = arith.constant dense<0.000000e+00> : vector<256xf32>
    %9 = vector.multi_reduction <add>, %8, %cst_3 [0] : vector<128x256xf32> to vector<256xf32>
    %10 = vector.shape_cast %9 : vector<256xf32> to vector<1x256xf32>
    %cst_4 = arith.constant 1.280000e+02 : f32
    %11 = vector.broadcast %cst_4 : f32 to vector<1x256xf32>
    %12 = arith.divf %10, %11 : vector<1x256xf32>
    %cst_5 = arith.constant 9.99999974E-6 : f32
    %13 = vector.broadcast %cst_5 : f32 to vector<1x256xf32>
    %14 = arith.addf %12, %13 : vector<1x256xf32>
    %15 = math.rsqrt %14 : vector<1x256xf32>
    %16 = vector.broadcast %15 : vector<1x256xf32> to vector<128x256xf32>
    %17 = arith.mulf %7, %16 : vector<128x256xf32>
    %c0_6 = arith.constant 0 : index
    %c0_7 = arith.constant 0 : index
    %18 = vector.load %arg3[%c0_6, %c0_7] : memref<128x1xf32, #tpu.memory_space<vmem>>, vector<128x1xf32>
    %19 = vector.broadcast %18 : vector<128x1xf32> to vector<128x256xf32>
    %20 = arith.mulf %17, %19 : vector<128x256xf32>
    %c0_8 = arith.constant 0 : index
    %c0_9 = arith.constant 0 : index
    %21 = vector.load %arg4[%c0_8, %c0_9] : memref<128x1xf32, #tpu.memory_space<vmem>>, vector<128x1xf32>
    %22 = vector.broadcast %21 : vector<128x1xf32> to vector<128x256xf32>
    %23 = arith.addf %20, %22 : vector<128x256xf32>
    %c0_10 = arith.constant 0 : index
    %c0_11 = arith.constant 0 : index
    %c0_12 = arith.constant 0 : index
    %24 = vector.load %arg5[%c0_10, %c0_11, %c0_12] : memref<1x128x256xf32, #tpu.memory_space<vmem>>, vector<1x128x256xf32>
    %25 = vector.shape_cast %24 : vector<1x128x256xf32> to vector<128x256xf32>
    %26 = vector.shape_cast %23 : vector<128x256xf32> to vector<1x128x256xf32>
    tpu.vector_store %arg5[%c0_10, %c0_11, %c0_12], %26 {strides = array<i32>} : memref<1x128x256xf32, #tpu.memory_space<vmem>>, vector<1x128x256xf32>,
    return
  }
  func.func @transform_0(%arg0: i32, %arg1: i32) -> (i32, i32, i32) {
    %c0_i32 = arith.constant 0 : i32
    %c0_i32_0 = arith.constant 0 : i32
    return %arg0, %c0_i32, %arg1 : i32, i32, i32
  }
  func.func @transform_1(%arg0: i32, %arg1: i32) -> (i32, i32) {
    %c0_i32 = arith.constant 0 : i32
    %c0_i32_0 = arith.constant 0 : i32
    %c0_i32_1 = arith.constant 0 : i32
    return %c0_i32, %c0_i32_0 : i32, i32
  }
  func.func @transform_2(%arg0: i32, %arg1: i32) -> (i32, i32) {
    %c0_i32 = arith.constant 0 : i32
    %c0_i32_0 = arith.constant 0 : i32
    %c0_i32_1 = arith.constant 0 : i32
    return %c0_i32, %c0_i32_0 : i32, i32
  }
  func.func @transform_3(%arg0: i32, %arg1: i32) -> (i32, i32, i32) {
    %c0_i32 = arith.constant 0 : i32
    %c0_i32_0 = arith.constant 0 : i32
    return %arg0, %c0_i32, %arg1 : i32, i32, i32
  }
}

</mosaic_0001>

<llo_original>
// kernel: tpu_custom_call.1
$region0: #{tpu_custom_call.1}
  #allocation0 [shape = 'u32[]', space=smem, size = 0x4, offset = 0x4, fixed_abs, tag = 'smem constant byte address 0x4 - core index']
  #allocation1 [shape = 'u32[144,128]{1,0:T(1,128)}', space=vmem, size = 0x12000, scoped, tag = 'internal scratch']
  %s0 = inlined_call_operand.hbm [shape: f32[2,128,256], index: 0, kind: input, shape index: {}]
  %s1 = inlined_call_operand.vmem [shape: f32[128,1], index: 1, kind: input, shape index: {}]
  %s2 = inlined_call_operand.vmem [shape: f32[128,1], index: 2, kind: input, shape index: {}]
  %s3 = inlined_call_operand.hbm [shape: f32[2,128,256], index: 3, kind: output, shape index: {}]
  %s4 = sld [smem:[#allocation0]]
  $region49: #{tpu_custom_call.1} parent=0
    _
  %s6 = ssub.s32 1, %s4
  %s7 = scalar_select 0, %s6, %s4
  $region1: #{tpu_custom_call.1} parent=0
    #allocation2 [shape = 'u8[262144]{0}', space=vmem, size = 0x40000, scoped, tag = 'input window, operand 0']
    #allocation3 [shape = 's32[2]{0}', space=sflag, size = 0x8, scoped, tag = 'scoped memory for tpu_custom_call.1']
    #allocation4 [shape = 's32[2]{0}', space=sflag, size = 0x8, scoped, tag = 'scoped memory for tpu_custom_call.1']
    #allocation5 [shape = 'u8[262144]{0}', space=vmem, size = 0x40000, scoped, tag = 'output window, operand 0']
    %8 = vsyncpa [#allocation3], 0
    %s9 = scalar_lea.sflag [#allocation3], 1
    %10 = vsyncpa %s9, 0
    %11 = vsyncpa [#allocation4], 0
    %s12 = scalar_lea.sflag [#allocation4], 1
    %13 = vsyncpa %s12, 0
    loop: start=0, step=1, limit=4
    $region2: #{tpu_custom_call.1} parent=1 // loop_pre_header
      _
    $region3: #{tpu_custom_call.1} parent=1 // loop_header
      %s15 = sphi 0, %s19
      %p16 = scmp.ge.s32.totalorder %s15, 4
      %s22 = sphi 0, %s34
      %s23 = sphi 0, %s30
      %s24 = sphi 0, %s22
      %s25 = sphi 0, %s23
      %s26 = sphi 0, %s24
      %s27 = sphi 0, %s25
      %s39 = sphi 0, %s41
      %s42 = sphi 0, %s39
      %s43 = sphi 0, %s42
      %s59 = sphi 0, %s43
      %s63 = sphi 0, %s63
      %s65 = sphi 0, %s63
      %s66 = sphi 0, %s65
      %s80 = sphi 0, %s66
      %s84 = sphi 0, %s84
      %s86 = sphi 0, %s84
      %s87 = sphi 0, %s86
      %s101 = sphi 0, %s87
      %s109 = sphi 0, %s111
      %s112 = sphi 0, %s109
      %s113 = sphi 0, %s112
      %s129 = sphi 0, %s113
    $region4: #{tpu_custom_call.1} parent=1 // loop_header_branch
      %18 = sbr.rel (%p16) target = $region8
    $region5: #{tpu_custom_call.1} parent=1 // loop_body
      %s20 = ssub.s32 %s15, 1
      %s21 = ssub.s32 %s15, 2
      %s28 = sadd.s32 1, %s23
      %p29 = scmp.ge.s32.totalorder %s28, 1
      %s30 = scalar_select %p29, 0, %s28
      %s31 = sadd.s32 1, %s22
      %s32 = scalar_select %p29, %s31, %s22
      %p33 = scmp.ge.s32.totalorder %s32, 2
      %s34 = scalar_select %p33, 0, %s32
      %s35 = ssub.s32 %s22, %s34
      %s36 = ssub.s32 %s23, %s30
      %s37 = sor.u32 %s35, %s36
      %p38 = scmp.eq.s32.totalorder %s37, 0
      %s40 = sadd.s32 %s39, 1
      %s41 = scalar_select %p38, %s39, %s40
      %p44 = pneg %p38
      %p45 = scmp.eq.s32.totalorder %s15, 1
      %p46 = por %p44, %p45
      %p47 = scmp.ne.s32.totalorder %s39, %s42
      %p48 = scmp.eq.s32.totalorder %s15, 0
      %p49 = por %p47, %p48
      %p50 = scmp.ne.s32.totalorder %s39, %s42
      %p51 = scmp.eq.s32.totalorder %s20, 1
      %p52 = por %p50, %p51
      %p53 = scmp.ne.s32.totalorder %s42, %s43
      %p54 = scmp.eq.s32.totalorder %s20, 0
      %p55 = por %p53, %p54
      %p56 = scmp.ne.s32.totalorder %s42, %s43
      %p57 = scmp.eq.s32.totalorder %s21, 1
      %p58 = por %p56, %p57
      %p60 = scmp.ne.s32.totalorder %s43, %s59
      %p61 = scmp.eq.s32.totalorder %s21, 0
      %p62 = por %p60, %p61
      %s64 = sadd.s32 %s63, 1
      %p67 = scmp.eq.s32.totalorder %s15, 1
      %p68 = scmp.ne.s32.totalorder %s63, %s65
      %p69 = scmp.eq.s32.totalorder %s15, 0
      %p70 = por %p68, %p69
      %p71 = scmp.ne.s32.totalorder %s63, %s65
      %p72 = scmp.eq.s32.totalorder %s20, 1
      %p73 = por %p71, %p72
      %p74 = scmp.ne.s32.totalorder %s65, %s66
      %p75 = scmp.eq.s32.totalorder %s20, 0
      %p76 = por %p74, %p75
      %p77 = scmp.ne.s32.totalorder %s65, %s66
      %p78 = scmp.eq.s32.totalorder %s21, 1
      %p79 = por %p77, %p78
      %p81 = scmp.ne.s32.totalorder %s66, %s80
      %p82 = scmp.eq.s32.totalorder %s21, 0
      %p83 = por %p81, %p82
      %s85 = sadd.s32 %s84, 1
      %p88 = scmp.eq.s32.totalorder %s15, 1
      %p89 = scmp.ne.s32.totalorder %s84, %s86
      %p90 = scmp.eq.s32.totalorder %s15, 0
      %p91 = por %p89, %p90
      %p92 = scmp.ne.s32.totalorder %s84, %s86
      %p93 = scmp.eq.s32.totalorder %s20, 1
      %p94 = por %p92, %p93
      %p95 = scmp.ne.s32.totalorder %s86, %s87
      %p96 = scmp.eq.s32.totalorder %s20, 0
      %p97 = por %p95, %p96
      %p98 = scmp.ne.s32.totalorder %s86, %s87
      %p99 = scmp.eq.s32.totalorder %s21, 1
      %p100 = por %p98, %p99
      %p102 = scmp.ne.s32.totalorder %s87, %s101
      %p103 = scmp.eq.s32.totalorder %s21, 0
      %p104 = por %p102, %p103
      %s105 = ssub.s32 %s22, %s34
      %s106 = ssub.s32 %s23, %s30
      %s107 = sor.u32 %s105, %s106
      %p108 = scmp.eq.s32.totalorder %s107, 0
      %s110 = sadd.s32 %s109, 1
      %s111 = scalar_select %p108, %s109, %s110
      %p114 = pneg %p108
      %p115 = scmp.eq.s32.totalorder %s15, 1
      %p116 = por %p114, %p115
      %p117 = scmp.ne.s32.totalorder %s109, %s112
      %p118 = scmp.eq.s32.totalorder %s15, 0
      %p119 = por %p117, %p118
      %p120 = scmp.ne.s32.totalorder %s109, %s112
      %p121 = scmp.eq.s32.totalorder %s20, 1
      %p122 = por %p120, %p121
      %p123 = scmp.ne.s32.totalorder %s112, %s113
      %p124 = scmp.eq.s32.totalorder %s20, 0
      %p125 = por %p123, %p124
      %p126 = scmp.ne.s32.totalorder %s112, %s113
      %p127 = scmp.eq.s32.totalorder %s21, 1
      %p128 = por %p126, %p127
      %p130 = scmp.ne.s32.totalorder %s113, %s129
      %p131 = scmp.eq.s32.totalorder %s21, 0
      %p132 = por %p130, %p131
      %p133 = scmp.le.s32.totalorder 1, %s15
      %p134 = scmp.lt.s32.totalorder %s15, 3
      %p135 = pnand %p133, %p134
      %p136 = pneg %p135
      // Predicated region
      $region9: #{tpu_custom_call.1} parent=5 // pred_check
        _
      $region10: #{tpu_custom_call.1} parent=5 // pred_check_branch
        %138 = sbr.rel (%p135) target = $region12
      $region11: #{tpu_custom_call.1} parent=5 // pred_region
        %s139 = ssub.s32 %s15, 1
        // Predicated region
        $region13: #{tpu_custom_call.1} parent=11 // pred_check
          %p140 = pneg %p76
        $region14: #{tpu_custom_call.1} parent=11 // pred_check_branch
          %142 = sbr.rel (%p140) target = $region16
        $region15: #{tpu_custom_call.1} parent=11 // pred_region
          _
        $region16: #{tpu_custom_call.1} parent=11 // pred_fallthru
          _
        // Predicated region
        $region17: #{tpu_custom_call.1} parent=11 // pred_check
          %p143 = pneg %p97
        $region18: #{tpu_custom_call.1} parent=11 // pred_check_branch
          %145 = sbr.rel (%p143) target = $region20
        $region19: #{tpu_custom_call.1} parent=11 // pred_region
          _
        $region20: #{tpu_custom_call.1} parent=11 // pred_fallthru
          _
      $region12: #{tpu_custom_call.1} parent=5 // pred_fallthru
        _
      %p146 = scmp.lt.s32.totalorder %s15, 2
      // Predicated region
      $region21: #{tpu_custom_call.1} parent=5 // pred_check
        %p147 = pneg %p146
      $region22: #{tpu_custom_call.1} parent=5 // pred_check_branch
        %149 = sbr.rel (%p147) target = $region24
      $region23: #{tpu_custom_call.1} parent=5 // pred_region
        // Predicated region
        $region25: #{tpu_custom_call.1} parent=23 // pred_check
          %p150 = pneg %p49
        $region26: #{tpu_custom_call.1} parent=23 // pred_check_branch
          %152 = sbr.rel (%p150) target = $region28
        $region27: #{tpu_custom_call.1} parent=23 // pred_region
          %s153 = sand.u32 %s39, 1
          %s154 = scalar_lea.sflag [#allocation3], %s153
          %s155 = sand.u32 %s39, 1
          %s156 = smul.addr %s155, 256
          %s157 = scalar_lea.vmem [#allocation2], %s156
          %s158 = smul.u32 2, %s23
          %s160 = ssub.s32 4096, 4096
          %161 = vsyncadd %s154, %s160
          %s162 = smul.addr %s22, 32
          %s163 = sadd.s32 %s158, %s162
          %s164 = smul.addr %s163, 128
          %s165 = scalar_lea.hbm %s0, %s164
          %s166 = sshll.u32 %s157, 4
          %s167 = int_to_ptr.vmem [resolvable:$true] %s166
          %172 = dma.hbm_to_vmem [thread:$0]  %s165, 4096, %s167, %s154, 256, 256, 16
        $region28: #{tpu_custom_call.1} parent=23 // pred_fallthru
          _
      $region24: #{tpu_custom_call.1} parent=5 // pred_fallthru
        _
      %p173 = scmp.le.s32.totalorder 1, %s15
      %p174 = scmp.lt.s32.totalorder %s15, 3
      %p175 = pnand %p173, %p174
      %p176 = pneg %p175
      // Predicated region
      $region29: #{tpu_custom_call.1} parent=5 // pred_check
        _
      $region30: #{tpu_custom_call.1} parent=5 // pred_check_branch
        %178 = sbr.rel (%p175) target = $region32
      $region31: #{tpu_custom_call.1} parent=5 // pred_region
        %s179 = ssub.s32 %s15, 1
        %s180 = sand.u32 %s42, 1
        %s181 = scalar_lea.sflag [#allocation3], %s180
        %s182 = sand.u32 %s42, 1
        %s183 = smul.addr %s182, 256
        %s184 = scalar_lea.vmem [#allocation2], %s183
        // Predicated region
        $region33: #{tpu_custom_call.1} parent=31 // pred_check
          %p185 = pneg %p55
        $region34: #{tpu_custom_call.1} parent=31 // pred_check_branch
          %187 = sbr.rel (%p185) target = $region36
        $region35: #{tpu_custom_call.1} parent=31 // pred_region
          %188 = dma.done %s181, 4096
        $region36: #{tpu_custom_call.1} parent=31 // pred_fallthru
          _
        %s189 = sand.u32 %s42, 1
        %s190 = scalar_lea.sflag [#allocation3], %s189
        %s191 = sand.u32 %s42, 1
        %s192 = smul.addr %s191, 256
        %s193 = scalar_lea.vmem [#allocation2], %s192
        %p194 = pneg %p55
        %p195 = pneg %p52
        %p196 = pneg %p76
        %p197 = pneg %p73
        %p198 = pneg %p97
        %p199 = pneg %p94
        %p200 = pneg %p125
        %p201 = pneg %p122
        %s202 = sand.u32 %s112, 1
        %s203 = scalar_lea.sflag [#allocation4], %s202
        %s204 = sand.u32 %s112, 1
        %s205 = smul.addr %s204, 256
        %s206 = scalar_lea.vmem [#allocation5], %s205
        %s207 = smul.u32 2, %s25
        %s208 = smul.u32 2, %s25
        %v209 = vld [vmem:[%s184] sm:$0xff]
        %v210 = vld [vmem:[%s184 + $0x8] sm:$0xff]
        %v211 = vld [vmem:[%s184 + $0x10] sm:$0xff]
        %v212 = vld [vmem:[%s184 + $0x18] sm:$0xff]
        %v213 = vld [vmem:[%s184 + $0x20] sm:$0xff]
        %v214 = vld [vmem:[%s184 + $0x28] sm:$0xff]
        %v215 = vld [vmem:[%s184 + $0x30] sm:$0xff]
        %v216 = vld [vmem:[%s184 + $0x38] sm:$0xff]
        %v217 = vld [vmem:[%s184 + $0x40] sm:$0xff]
        %v218 = vld [vmem:[%s184 + $0x48] sm:$0xff]
        %v219 = vld [vmem:[%s184 + $0x50] sm:$0xff]
        %v220 = vld [vmem:[%s184 + $0x58] sm:$0xff]
        %v221 = vld [vmem:[%s184 + $0x60] sm:$0xff]
        %v222 = vld [vmem:[%s184 + $0x68] sm:$0xff]
        %v223 = vld [vmem:[%s184 + $0x70] sm:$0xff]
        %v224 = vld [vmem:[%s184 + $0x78] sm:$0xff]
        %v225 = vld [vmem:[%s184 + $0x80] sm:$0xff]
        %v226 = vld [vmem:[%s184 + $0x88] sm:$0xff]
        %v227 = vld [vmem:[%s184 + $0x90] sm:$0xff]
        %v228 = vld [vmem:[%s184 + $0x98] sm:$0xff]
        %v229 = vld [vmem:[%s184 + $0xa0] sm:$0xff]
        %v230 = vld [vmem:[%s184 + $0xa8] sm:$0xff]
        %v231 = vld [vmem:[%s184 + $0xb0] sm:$0xff]
        %v232 = vld [vmem:[%s184 + $0xb8] sm:$0xff]
        %v233 = vld [vmem:[%s184 + $0xc0] sm:$0xff]
        %v234 = vld [vmem:[%s184 + $0xc8] sm:$0xff]
        %v235 = vld [vmem:[%s184 + $0xd0] sm:$0xff]
        %v236 = vld [vmem:[%s184 + $0xd8] sm:$0xff]
        %v237 = vld [vmem:[%s184 + $0xe0] sm:$0xff]
        %v238 = vld [vmem:[%s184 + $0xe8] sm:$0xff]
        %v239 = vld [vmem:[%s184 + $0xf0] sm:$0xff]
        %v240 = vld [vmem:[%s184 + $0xf8] sm:$0xff]
        %v241 = vadd.f32 %v209, %v211
        %v242 = vadd.f32 %v241, %v213
        %v243 = vadd.f32 %v242, %v215
        %v244 = vadd.f32 %v243, %v217
        %v245 = vadd.f32 %v244, %v219
        %v246 = vadd.f32 %v245, %v221
        %v247 = vadd.f32 %v246, %v223
        %v248 = vadd.f32 %v247, %v225
        %v249 = vadd.f32 %v248, %v227
        %v250 = vadd.f32 %v249, %v229
        %v251 = vadd.f32 %v250, %v231
        %v252 = vadd.f32 %v251, %v233
        %v253 = vadd.f32 %v252, %v235
        %v254 = vadd.f32 %v253, %v237
        %v255 = vadd.f32 %v254, %v239
        %v256 = vrot.slane %v255, 4
        %v257 = vadd.f32 %v255, %v256
        %v258 = vrot.slane %v257, 2
        %v259 = vadd.f32 %v257, %v258
        %v260 = vrot.slane %v259, 1
        %v261 = vadd.f32 %v259, %v260
        %v262 = vadd.f32 %v210, %v212
        %v263 = vadd.f32 %v262, %v214
        %v264 = vadd.f32 %v263, %v216
        %v265 = vadd.f32 %v264, %v218
        %v266 = vadd.f32 %v265, %v220
        %v267 = vadd.f32 %v266, %v222
        %v268 = vadd.f32 %v267, %v224
        %v269 = vadd.f32 %v268, %v226
        %v270 = vadd.f32 %v269, %v228
        %v271 = vadd.f32 %v270, %v230
        %v272 = vadd.f32 %v271, %v232
        %v273 = vadd.f32 %v272, %v234
        %v274 = vadd.f32 %v273, %v236
        %v275 = vadd.f32 %v274, %v238
        %v276 = vadd.f32 %v275, %v240
        %v277 = vrot.slane %v276, 4
        %v278 = vadd.f32 %v276, %v277
        %v279 = vrot.slane %v278, 2
        %v280 = vadd.f32 %v278, %v279
        %v281 = vrot.slane %v280, 1
        %v282 = vadd.f32 %v280, %v281
        %v283 = vrcp.pop 128.0
        %v284 = vmul.f32 %v261, %v283
        %v285 = vmul.f32 %v282, %v283
        %v286 = vsub.f32 %v209, %v284
        %v287 = vsub.f32 %v210, %v285
        %v288 = vsub.f32 %v211, %v284
        %v289 = vsub.f32 %v212, %v285
        %v290 = vsub.f32 %v213, %v284
        %v291 = vsub.f32 %v214, %v285
        %v292 = vsub.f32 %v215, %v284
        %v293 = vsub.f32 %v216, %v285
        %v294 = vsub.f32 %v217, %v284
        %v295 = vsub.f32 %v218, %v285
        %v296 = vsub.f32 %v219, %v284
        %v297 = vsub.f32 %v220, %v285
        %v298 = vsub.f32 %v221, %v284
        %v299 = vsub.f32 %v222, %v285
        %v300 = vsub.f32 %v223, %v284
        %v301 = vsub.f32 %v224, %v285
        %v302 = vsub.f32 %v225, %v284
        %v303 = vsub.f32 %v226, %v285
        %v304 = vsub.f32 %v227, %v284
        %v305 = vsub.f32 %v228, %v285
        %v306 = vsub.f32 %v229, %v284
        %v307 = vsub.f32 %v230, %v285
        %v308 = vsub.f32 %v231, %v284
        %v309 = vsub.f32 %v232, %v285
        %v310 = vsub.f32 %v233, %v284
        %v311 = vsub.f32 %v234, %v285
        %v312 = vsub.f32 %v235, %v284
        %v313 = vsub.f32 %v236, %v285
        %v314 = vsub.f32 %v237, %v284
        %v315 = vsub.f32 %v238, %v285
        %v316 = vsub.f32 %v239, %v284
        %v317 = vsub.f32 %v240, %v285
        %v318 = vmul.f32 %v286, %v286
        %v319 = vmul.f32 %v287, %v287
        %v320 = vmul.f32 %v288, %v288
        %v321 = vmul.f32 %v289, %v289
        %v322 = vmul.f32 %v290, %v290
        %v323 = vmul.f32 %v291, %v291
        %v324 = vmul.f32 %v292, %v292
        %v325 = vmul.f32 %v293, %v293
        %v326 = vmul.f32 %v294, %v294
        %v327 = vmul.f32 %v295, %v295
        %v328 = vmul.f32 %v296, %v296
        %v329 = vmul.f32 %v297, %v297
        %v330 = vmul.f32 %v298, %v298
        %v331 = vmul.f32 %v299, %v299
        %v332 = vmul.f32 %v300, %v300
        %v333 = vmul.f32 %v301, %v301
        %v334 = vmul.f32 %v302, %v302
        %v335 = vmul.f32 %v303, %v303
        %v336 = vmul.f32 %v304, %v304
        %v337 = vmul.f32 %v305, %v305
        %v338 = vmul.f32 %v306, %v306
        %v339 = vmul.f32 %v307, %v307
        %v340 = vmul.f32 %v308, %v308
        %v341 = vmul.f32 %v309, %v309
        %v342 = vmul.f32 %v310, %v310
        %v343 = vmul.f32 %v311, %v311
        %v344 = vmul.f32 %v312, %v312
        %v345 = vmul.f32 %v313, %v313
        %v346 = vmul.f32 %v314, %v314
        %v347 = vmul.f32 %v315, %v315
        %v348 = vmul.f32 %v316, %v316
        %v349 = vmul.f32 %v317, %v317
        %v350 = vadd.f32 %v318, %v320
        %v351 = vadd.f32 %v350, %v322
        %v352 = vadd.f32 %v351, %v324
        %v353 = vadd.f32 %v352, %v326
        %v354 = vadd.f32 %v353, %v328
        %v355 = vadd.f32 %v354, %v330
        %v356 = vadd.f32 %v355, %v332
        %v357 = vadd.f32 %v356, %v334
        %v358 = vadd.f32 %v357, %v336
        %v359 = vadd.f32 %v358, %v338
        %v360 = vadd.f32 %v359, %v340
        %v361 = vadd.f32 %v360, %v342
        %v362 = vadd.f32 %v361, %v344
        %v363 = vadd.f32 %v362, %v346
        %v364 = vadd.f32 %v363, %v348
        %v365 = vrot.slane %v364, 4
        %v366 = vadd.f32 %v364, %v365
        %v367 = vrot.slane %v366, 2
        %v368 = vadd.f32 %v366, %v367
        %v369 = vrot.slane %v368, 1
        %v370 = vadd.f32 %v368, %v369
        %v371 = vadd.f32 %v319, %v321
        %v372 = vadd.f32 %v371, %v323
        %v373 = vadd.f32 %v372, %v325
        %v374 = vadd.f32 %v373, %v327
        %v375 = vadd.f32 %v374, %v329
        %v376 = vadd.f32 %v375, %v331
        %v377 = vadd.f32 %v376, %v333
        %v378 = vadd.f32 %v377, %v335
        %v379 = vadd.f32 %v378, %v337
        %v380 = vadd.f32 %v379, %v339
        %v381 = vadd.f32 %v380, %v341
        %v382 = vadd.f32 %v381, %v343
        %v383 = vadd.f32 %v382, %v345
        %v384 = vadd.f32 %v383, %v347
        %v385 = vadd.f32 %v384, %v349
        %v386 = vrot.slane %v385, 4
        %v387 = vadd.f32 %v385, %v386
        %v388 = vrot.slane %v387, 2
        %v389 = vadd.f32 %v387, %v388
        %v390 = vrot.slane %v389, 1
        %v391 = vadd.f32 %v389, %v390
        %v392 = vmul.f32 %v370, %v283
        %v393 = vmul.f32 %v391, %v283
        %v394 = vadd.f32 %v392, 1e-05
        %v395 = vadd.f32 %v393, 1e-05
        %v396 = vrsqrt.pop %v394
        %v397 = vrsqrt.pop %v395
        %v398 = vmul.f32 %v286, %v396
        %v399 = vmul.f32 %v287, %v397
        %v400 = vmul.f32 %v288, %v396
        %v401 = vmul.f32 %v289, %v397
        %v402 = vmul.f32 %v290, %v396
        %v403 = vmul.f32 %v291, %v397
        %v404 = vmul.f32 %v292, %v396
        %v405 = vmul.f32 %v293, %v397
        %v406 = vmul.f32 %v294, %v396
        %v407 = vmul.f32 %v295, %v397
        %v408 = vmul.f32 %v296, %v396
        %v409 = vmul.f32 %v297, %v397
        %v410 = vmul.f32 %v298, %v396
        %v411 = vmul.f32 %v299, %v397
        %v412 = vmul.f32 %v300, %v396
        %v413 = vmul.f32 %v301, %v397
        %v414 = vmul.f32 %v302, %v396
        %v415 = vmul.f32 %v303, %v397
        %v416 = vmul.f32 %v304, %v396
        %v417 = vmul.f32 %v305, %v397
        %v418 = vmul.f32 %v306, %v396
        %v419 = vmul.f32 %v307, %v397
        %v420 = vmul.f32 %v308, %v396
        %v421 = vmul.f32 %v309, %v397
        %v422 = vmul.f32 %v310, %v396
        %v423 = vmul.f32 %v311, %v397
        %v424 = vmul.f32 %v312, %v396
        %v425 = vmul.f32 %v313, %v397
        %v426 = vmul.f32 %v314, %v396
        %v427 = vmul.f32 %v315, %v397
        %v428 = vmul.f32 %v316, %v396
        %v429 = vmul.f32 %v317, %v397
        %v430 = vld [vmem:[%s1] sm:$0xff]
        %v431 = vld [vmem:[%s1 + $0x8] sm:$0xff]
        %v432 = vld [vmem:[%s1 + $0x10] sm:$0xff]
        %v433 = vld [vmem:[%s1 + $0x18] sm:$0xff]
        %v434 = vld [vmem:[%s1 + $0x20] sm:$0xff]
        %v435 = vld [vmem:[%s1 + $0x28] sm:$0xff]
        %v436 = vld [vmem:[%s1 + $0x30] sm:$0xff]
        %v437 = vld [vmem:[%s1 + $0x38] sm:$0xff]
        %v438 = vld [vmem:[%s1 + $0x40] sm:$0xff]
        %v439 = vld [vmem:[%s1 + $0x48] sm:$0xff]
        %v440 = vld [vmem:[%s1 + $0x50] sm:$0xff]
        %v441 = vld [vmem:[%s1 + $0x58] sm:$0xff]
        %v442 = vld [vmem:[%s1 + $0x60] sm:$0xff]
        %v443 = vld [vmem:[%s1 + $0x68] sm:$0xff]
        %v444 = vld [vmem:[%s1 + $0x70] sm:$0xff]
        %v445 = vld [vmem:[%s1 + $0x78] sm:$0xff]
        %447 = vset.pattern.permute.xlu0 0
        %448 = vperm.xlu0 %447, %v430
        %v449 = vpop.permute.xlu0 %448
        %452 = vset.pattern.permute.xlu0 0
        %453 = vperm.xlu0 %452, %v431
        %v454 = vpop.permute.xlu0 %453
        %457 = vset.pattern.permute.xlu0 0
        %458 = vperm.xlu0 %457, %v432
        %v459 = vpop.permute.xlu0 %458
        %462 = vset.pattern.permute.xlu0 0
        %463 = vperm.xlu0 %462, %v433
        %v464 = vpop.permute.xlu0 %463
        %467 = vset.pattern.permute.xlu0 0
        %468 = vperm.xlu0 %467, %v434
        %v469 = vpop.permute.xlu0 %468
        %472 = vset.pattern.permute.xlu0 0
        %473 = vperm.xlu0 %472, %v435
        %v474 = vpop.permute.xlu0 %473
        %477 = vset.pattern.permute.xlu0 0
        %478 = vperm.xlu0 %477, %v436
        %v479 = vpop.permute.xlu0 %478
        %482 = vset.pattern.permute.xlu0 0
        %483 = vperm.xlu0 %482, %v437
        %v484 = vpop.permute.xlu0 %483
        %487 = vset.pattern.permute.xlu0 0
        %488 = vperm.xlu0 %487, %v438
        %v489 = vpop.permute.xlu0 %488
        %492 = vset.pattern.permute.xlu0 0
        %493 = vperm.xlu0 %492, %v439
        %v494 = vpop.permute.xlu0 %493
        %497 = vset.pattern.permute.xlu0 0
        %498 = vperm.xlu0 %497, %v440
        %v499 = vpop.permute.xlu0 %498
        %502 = vset.pattern.permute.xlu0 0
        %503 = vperm.xlu0 %502, %v441
        %v504 = vpop.permute.xlu0 %503
        %507 = vset.pattern.permute.xlu0 0
        %508 = vperm.xlu0 %507, %v442
        %v509 = vpop.permute.xlu0 %508
        %512 = vset.pattern.permute.xlu0 0
        %513 = vperm.xlu0 %512, %v443
        %v514 = vpop.permute.xlu0 %513
        %517 = vset.pattern.permute.xlu0 0
        %518 = vperm.xlu0 %517, %v444
        %v519 = vpop.permute.xlu0 %518
        %522 = vset.pattern.permute.xlu0 0
        %523 = vperm.xlu0 %522, %v445
        %v524 = vpop.permute.xlu0 %523
        %v526 = vmul.f32 %v398, %v449
        %v527 = vmul.f32 %v399, %v449
        %v528 = vmul.f32 %v400, %v454
        %v529 = vmul.f32 %v401, %v454
        %v530 = vmul.f32 %v402, %v459
        %v531 = vmul.f32 %v403, %v459
        %v532 = vmul.f32 %v404, %v464
        %v533 = vmul.f32 %v405, %v464
        %v534 = vmul.f32 %v406, %v469
        %v535 = vmul.f32 %v407, %v469
        %v536 = vmul.f32 %v408, %v474
        %v537 = vmul.f32 %v409, %v474
        %v538 = vmul.f32 %v410, %v479
        %v539 = vmul.f32 %v411, %v479
        %v540 = vmul.f32 %v412, %v484
        %v541 = vmul.f32 %v413, %v484
        %v542 = vmul.f32 %v414, %v489
        %v543 = vmul.f32 %v415, %v489
        %v544 = vmul.f32 %v416, %v494
        %v545 = vmul.f32 %v417, %v494
        %v546 = vmul.f32 %v418, %v499
        %v547 = vmul.f32 %v419, %v499
        %v548 = vmul.f32 %v420, %v504
        %v549 = vmul.f32 %v421, %v504
        %v550 = vmul.f32 %v422, %v509
        %v551 = vmul.f32 %v423, %v509
        %v552 = vmul.f32 %v424, %v514
        %v553 = vmul.f32 %v425, %v514
        %v554 = vmul.f32 %v426, %v519
        %v555 = vmul.f32 %v427, %v519
        %v556 = vmul.f32 %v428, %v524
        %v557 = vmul.f32 %v429, %v524
        %v558 = vld [vmem:[%s2] sm:$0xff]
        %v559 = vld [vmem:[%s2 + $0x8] sm:$0xff]
        %v560 = vld [vmem:[%s2 + $0x10] sm:$0xff]
        %v561 = vld [vmem:[%s2 + $0x18] sm:$0xff]
        %v562 = vld [vmem:[%s2 + $0x20] sm:$0xff]
        %v563 = vld [vmem:[%s2 + $0x28] sm:$0xff]
        %v564 = vld [vmem:[%s2 + $0x30] sm:$0xff]
        %v565 = vld [vmem:[%s2 + $0x38] sm:$0xff]
        %v566 = vld [vmem:[%s2 + $0x40] sm:$0xff]
        %v567 = vld [vmem:[%s2 + $0x48] sm:$0xff]
        %v568 = vld [vmem:[%s2 + $0x50] sm:$0xff]
        %v569 = vld [vmem:[%s2 + $0x58] sm:$0xff]
        %v570 = vld [vmem:[%s2 + $0x60] sm:$0xff]
        %v571 = vld [vmem:[%s2 + $0x68] sm:$0xff]
        %v572 = vld [vmem:[%s2 + $0x70] sm:$0xff]
        %v573 = vld [vmem:[%s2 + $0x78] sm:$0xff]
        %575 = vset.pattern.permute.xlu0 0
        %576 = vperm.xlu0 %575, %v558
        %v577 = vpop.permute.xlu0 %576
        %580 = vset.pattern.permute.xlu0 0
        %581 = vperm.xlu0 %580, %v559
        %v582 = vpop.permute.xlu0 %581
        %585 = vset.pattern.permute.xlu0 0
        %586 = vperm.xlu0 %585, %v560
        %v587 = vpop.permute.xlu0 %586
        %590 = vset.pattern.permute.xlu0 0
        %591 = vperm.xlu0 %590, %v561
        %v592 = vpop.permute.xlu0 %591
        %595 = vset.pattern.permute.xlu0 0
        %596 = vperm.xlu0 %595, %v562
        %v597 = vpop.permute.xlu0 %596
        %600 = vset.pattern.permute.xlu0 0
        %601 = vperm.xlu0 %600, %v563
        %v602 = vpop.permute.xlu0 %601
        %605 = vset.pattern.permute.xlu0 0
        %606 = vperm.xlu0 %605, %v564
        %v607 = vpop.permute.xlu0 %606
        %610 = vset.pattern.permute.xlu0 0
        %611 = vperm.xlu0 %610, %v565
        %v612 = vpop.permute.xlu0 %611
        %615 = vset.pattern.permute.xlu0 0
        %616 = vperm.xlu0 %615, %v566
        %v617 = vpop.permute.xlu0 %616
        %620 = vset.pattern.permute.xlu0 0
        %621 = vperm.xlu0 %620, %v567
        %v622 = vpop.permute.xlu0 %621
        %625 = vset.pattern.permute.xlu0 0
        %626 = vperm.xlu0 %625, %v568
        %v627 = vpop.permute.xlu0 %626
        %630 = vset.pattern.permute.xlu0 0
        %631 = vperm.xlu0 %630, %v569
        %v632 = vpop.permute.xlu0 %631
        %635 = vset.pattern.permute.xlu0 0
        %636 = vperm.xlu0 %635, %v570
        %v637 = vpop.permute.xlu0 %636
        %640 = vset.pattern.permute.xlu0 0
        %641 = vperm.xlu0 %640, %v571
        %v642 = vpop.permute.xlu0 %641
        %645 = vset.pattern.permute.xlu0 0
        %646 = vperm.xlu0 %645, %v572
        %v647 = vpop.permute.xlu0 %646
        %650 = vset.pattern.permute.xlu0 0
        %651 = vperm.xlu0 %650, %v573
        %v652 = vpop.permute.xlu0 %651
        %v654 = vadd.f32 %v526, %v577
        %v655 = vadd.f32 %v527, %v577
        %v656 = vadd.f32 %v528, %v582
        %v657 = vadd.f32 %v529, %v582
        %v658 = vadd.f32 %v530, %v587
        %v659 = vadd.f32 %v531, %v587
        %v660 = vadd.f32 %v532, %v592
        %v661 = vadd.f32 %v533, %v592
        %v662 = vadd.f32 %v534, %v597
        %v663 = vadd.f32 %v535, %v597
        %v664 = vadd.f32 %v536, %v602
        %v665 = vadd.f32 %v537, %v602
        %v666 = vadd.f32 %v538, %v607
        %v667 = vadd.f32 %v539, %v607
        %v668 = vadd.f32 %v540, %v612
        %v669 = vadd.f32 %v541, %v612
        %v670 = vadd.f32 %v542, %v617
        %v671 = vadd.f32 %v543, %v617
        %v672 = vadd.f32 %v544, %v622
        %v673 = vadd.f32 %v545, %v622
        %v674 = vadd.f32 %v546, %v627
        %v675 = vadd.f32 %v547, %v627
        %v676 = vadd.f32 %v548, %v632
        %v677 = vadd.f32 %v549, %v632
        %v678 = vadd.f32 %v550, %v637
        %v679 = vadd.f32 %v551, %v637
        %v680 = vadd.f32 %v552, %v642
        %v681 = vadd.f32 %v553, %v642
        %v682 = vadd.f32 %v554, %v647
        %v683 = vadd.f32 %v555, %v647
        %v684 = vadd.f32 %v556, %v652
        %v685 = vadd.f32 %v557, %v652
        %686 = vst [vmem:[%s206] sm:$0xff] %v654
        %687 = vst [vmem:[%s206 + $0x8] sm:$0xff] %v655
        %688 = vst [vmem:[%s206 + $0x10] sm:$0xff] %v656
        %689 = vst [vmem:[%s206 + $0x18] sm:$0xff] %v657
        %690 = vst [vmem:[%s206 + $0x20] sm:$0xff] %v658
        %691 = vst [vmem:[%s206 + $0x28] sm:$0xff] %v659
        %692 = vst [vmem:[%s206 + $0x30] sm:$0xff] %v660
        %693 = vst [vmem:[%s206 + $0x38] sm:$0xff] %v661
        %694 = vst [vmem:[%s206 + $0x40] sm:$0xff] %v662
        %695 = vst [vmem:[%s206 + $0x48] sm:$0xff] %v663
        %696 = vst [vmem:[%s206 + $0x50] sm:$0xff] %v664
        %697 = vst [vmem:[%s206 + $0x58] sm:$0xff] %v665
        %698 = vst [vmem:[%s206 + $0x60] sm:$0xff] %v666
        %699 = vst [vmem:[%s206 + $0x68] sm:$0xff] %v667
        %700 = vst [vmem:[%s206 + $0x70] sm:$0xff] %v668
        %701 = vst [vmem:[%s206 + $0x78] sm:$0xff] %v669
        %702 = vst [vmem:[%s206 + $0x80] sm:$0xff] %v670
        %703 = vst [vmem:[%s206 + $0x88] sm:$0xff] %v671
        %704 = vst [vmem:[%s206 + $0x90] sm:$0xff] %v672
        %705 = vst [vmem:[%s206 + $0x98] sm:$0xff] %v673
        %706 = vst [vmem:[%s206 + $0xa0] sm:$0xff] %v674
        %707 = vst [vmem:[%s206 + $0xa8] sm:$0xff] %v675
        %708 = vst [vmem:[%s206 + $0xb0] sm:$0xff] %v676
        %709 = vst [vmem:[%s206 + $0xb8] sm:$0xff] %v677
        %710 = vst [vmem:[%s206 + $0xc0] sm:$0xff] %v678
        %711 = vst [vmem:[%s206 + $0xc8] sm:$0xff] %v679
        %712 = vst [vmem:[%s206 + $0xd0] sm:$0xff] %v680
        %713 = vst [vmem:[%s206 + $0xd8] sm:$0xff] %v681
        %714 = vst [vmem:[%s206 + $0xe0] sm:$0xff] %v682
        %715 = vst [vmem:[%s206 + $0xe8] sm:$0xff] %v683
        %716 = vst [vmem:[%s206 + $0xf0] sm:$0xff] %v684
        %717 = vst [vmem:[%s206 + $0xf8] sm:$0xff] %v685
        %s718 = sand.u32 %s112, 1
        %s719 = scalar_lea.sflag [#allocation4], %s718
        %s720 = sand.u32 %s112, 1
        %s721 = smul.addr %s720, 256
        %s722 = scalar_lea.vmem [#allocation5], %s721
        // Predicated region
        $region37: #{tpu_custom_call.1} parent=31 // pred_check
          %p723 = pneg %p122
        $region38: #{tpu_custom_call.1} parent=31 // pred_check_branch
          %725 = sbr.rel (%p723) target = $region40
        $region39: #{tpu_custom_call.1} parent=31 // pred_region
          %s726 = smul.u32 2, %s25
          %s728 = ssub.s32 4096, 4096
          %729 = vsyncadd %s719, %s728
          %s730 = smul.addr %s24, 32
          %s731 = sadd.s32 %s726, %s730
          %s732 = smul.addr %s731, 128
          %s733 = scalar_lea.hbm %s3, %s732
          %s734 = sshll.u32 %s722, 4
          %s735 = int_to_ptr.vmem [resolvable:$true] %s734
          %740 = dma.vmem_to_hbm [thread:$0]  %s735, 4096, %s733, %s719, 256, 256, 16
        $region40: #{tpu_custom_call.1} parent=31 // pred_fallthru
          _
      $region32: #{tpu_custom_call.1} parent=5 // pred_fallthru
        _
      %p741 = scmp.le.s32.totalorder 2, %s15
      // Predicated region
      $region41: #{tpu_custom_call.1} parent=5 // pred_check
        %p742 = pneg %p741
      $region42: #{tpu_custom_call.1} parent=5 // pred_check_branch
        %744 = sbr.rel (%p742) target = $region44
      $region43: #{tpu_custom_call.1} parent=5 // pred_region
        %s745 = ssub.s32 %s15, 2
        // Predicated region
        $region45: #{tpu_custom_call.1} parent=43 // pred_check
          %p746 = pneg %p128
        $region46: #{tpu_custom_call.1} parent=43 // pred_check_branch
          %748 = sbr.rel (%p746) target = $region48
        $region47: #{tpu_custom_call.1} parent=43 // pred_region
          %s749 = sand.u32 %s113, 1
          %s750 = scalar_lea.sflag [#allocation4], %s749
          %s751 = sand.u32 %s113, 1
          %s752 = smul.addr %s751, 256
          %s753 = scalar_lea.vmem [#allocation5], %s752
          %754 = dma.done %s750, 4096
        $region48: #{tpu_custom_call.1} parent=43 // pred_fallthru
          _
      $region44: #{tpu_custom_call.1} parent=5 // pred_fallthru
        _
    $region6: #{tpu_custom_call.1} parent=1 // loop_footer
      %s19 = sadd.s32 1, %s15
    $region7: #{tpu_custom_call.1} parent=1 // loop_footer_branch
      %14 = sbr.rel target = $region3
    $region8: #{tpu_custom_call.1} parent=1 // loop_exit
      _
    %755 = vsyncpa [#allocation3], 1
    %s756 = scalar_lea.sflag [#allocation3], 1
    %757 = vsyncpa %s756, 1
    %758 = vsyncpa [#allocation4], 1
    %s759 = scalar_lea.sflag [#allocation4], 1
    %760 = vsyncpa %s759, 1

</llo_original>
